<compile_context>
chip_gen: v7x
topology: tpu7x:2x2x1
jax: 0.10.0
libtpu: 0.0.40
codegen_flags: <defaults>
</compile_context>

<pallas_src>
import functools

import jax
import jax.numpy as jnp
from jax.experimental import pallas as pl
from jax.experimental.pallas import tpu as pltpu


def _simplenet_kernel(x_ref, w1_ref, b1_ref, w2t_ref, b2_ref, out_ref):
    # Cast x to bf16 here (under the DMA, VPU slot has huge slack) instead of in the
    # wrapper: saves a full extra HBM round trip of the only large input.
    x_bf = x_ref[...].astype(jnp.bfloat16)
    # Hidden layer on the MXU: bf16 operands, f32 accumulation.
    h = jnp.dot(x_bf, w1_ref[...], preferred_element_type=jnp.float32)
    h = jnp.maximum(h + b1_ref[...], 0.0)                     # bias + ReLU in f32 (VPU)
    # Regression head: K=10, N=1 contraction -> VPU multiply + lane reduction
    # (a 10x1 matmul is <1% MXU utilization and just a pipeline bubble).
    y = jnp.sum(h * w2t_ref[...], axis=-1, keepdims=True)     # (tile_b, 1)
    out_ref[...] = (y + b2_ref[0, 0]).astype(out_ref.dtype)   # scalar bias from SMEM


def _round_up(n, m):
    return ((n + m - 1) // m) * m


def _pick_tile_b(batch, tile_b_max):
    """Batch tile: big enough to amortize per-step overhead, but always >= 4 grid
    steps when the batch allows it so v7x's two TensorCores each get >= 2 pipelined
    steps.  Tile is a multiple of 8 (sublane constraint) unless it equals B."""
    if batch <= 8:
        return batch
    target = max(8, _round_up(pl.cdiv(batch, 4), 8))
    return min(tile_b_max, target, _round_up(batch, 8))


@functools.partial(jax.jit, static_argnames=("tile_b",))
def simplenet_forward(x, w1, b1, w2, b2, *, tile_b=1024):
    """y = relu(x @ w1 + b1) @ w2 + b2   (weights stored [in, out], i.e. torch W.T)."""
    B, D_in = x.shape
    D_hid = w1.shape[1]
    D_out = w2.shape[1]
    tb = _pick_tile_b(B, tile_b)
    grid = (pl.cdiv(B, tb),)

    # Weights are tiny: prepare them once in the layouts the kernel wants.
    w1_bf = w1.astype(jnp.bfloat16)                                # (784, 10) bf16
    w2t = jnp.reshape(w2, (D_hid, D_out)).T.astype(jnp.float32)    # (1, 10) lane-dense
    b1_f = jnp.reshape(b1, (1, D_hid)).astype(jnp.float32)         # (1, 10)
    b2_f = jnp.reshape(b2, (1, 1)).astype(jnp.float32)             # (1, 1) -> SMEM

    return pl.pallas_call(
        _simplenet_kernel,
        out_shape=jax.ShapeDtypeStruct((B, D_out), jnp.float32),
        grid_spec=pl.GridSpec(
            grid=grid,
            in_specs=[
                pl.BlockSpec((tb, D_in), lambda i: (i, 0)),         # x: tiled over batch
                pl.BlockSpec((D_in, D_hid), lambda i: (0, 0)),      # w1: VMEM-resident
                pl.BlockSpec((1, D_hid), lambda i: (0, 0)),         # b1: VMEM-resident
                pl.BlockSpec((D_out, D_hid), lambda i: (0, 0)),     # w2^T: VMEM-resident
                pl.BlockSpec(memory_space=pltpu.MemorySpace.SMEM),  # b2: SMEM scalar
            ],
            out_specs=pl.BlockSpec((tb, D_out), lambda i: (i, 0)),
        ),
        compiler_params=pltpu.CompilerParams(
            # Batch axis is embarrassingly parallel -> sharded across the 2 TCs on
            # v7x; harmless on single-TC v5e/v6e.
            dimension_semantics=("parallel",),
            # 32 MiB: <= half of v7x's 64 MiB per-TC VMEM (leaves compiler headroom),
            # above v5e's 16 MiB scoped default so large batch tiles still compile.
            vmem_limit_bytes=32 * 1024 * 1024,
        ),
    )(x.astype(jnp.float32), w1_bf, b1_f, w2t, b2_f)


def init_params(key):
    # Deterministic init mimicking PyTorch nn.Linear: U(-1/sqrt(fan_in), 1/sqrt(fan_in))
    k1, k2, k3, k4 = jax.random.split(key, 4)
    bound1 = 1.0 / jnp.sqrt(784.0)
    bound2 = 1.0 / jnp.sqrt(10.0)
    w1 = jax.random.uniform(k1, (784, 10), jnp.float32, -bound1, bound1)
    b1 = jax.random.uniform(k2, (1, 10), jnp.float32, -bound1, bound1)
    w2 = jax.random.uniform(k3, (10, 1), jnp.float32, -bound2, bound2)
    b2 = jax.random.uniform(k4, (1, 1), jnp.float32, -bound2, bound2)
    return w1, b1, w2, b2


if __name__ == "__main__":
    key = jax.random.PRNGKey(0)
    kx, kp = jax.random.split(key)
    B = 256  # tile picker -> tile_b=64, 4 grid steps (2 per TC on v7x), pipeline exercised
    x = jax.random.normal(kx, (B, 784), jnp.float32)
    w1, b1, w2, b2 = init_params(kp)

    out = jax.block_until_ready(simplenet_forward(x, w1, b1, w2, b2))
    assert out.shape == (B, 1)

    # Reference 1: matched precision (bf16 first-matmul operands, f32 accumulation).
    h_ref = jnp.maximum(
        jnp.dot(x.astype(jnp.bfloat16), w1.astype(jnp.bfloat16),
                preferred_element_type=jnp.float32) + b1, 0.0)
    ref_matched = h_ref @ w2 + b2
    assert jnp.allclose(out, ref_matched, atol=1e-3, rtol=1e-3)

    # Reference 2: full f32 reference -> loose tolerance covering the bf16 cast of x/w1.
    ref_f32 = jnp.maximum(x @ w1 + b1, 0.0) @ w2 + b2
    assert jnp.allclose(out, ref_f32, atol=3e-2, rtol=3e-2)

    print("KERNEL_OK")
</pallas_src>

<mosaic_0001>
module attributes {stable_mosaic.version = 11 : i64} {
  func.func @_simplenet_kernel(%arg0: i32, %arg1: memref<64x784xf32, #tpu.memory_space<vmem>>, %arg2: memref<784x10xbf16, #tpu.memory_space<vmem>>, %arg3: memref<1x10xf32, #tpu.memory_space<vmem>>, %arg4: memref<1x10xf32, #tpu.memory_space<vmem>>, %arg5: memref<1x1xf32, #tpu.memory_space<smem>>, %arg6: memref<64x1xf32, #tpu.memory_space<vmem>>) attributes {dimension_semantics = [#tpu.dimension_semantics<parallel>], iteration_bounds = array<i64: 4>, scalar_prefetch = 0 : i64, scratch_operands = 0 : i64, tpu.core_type = #tpu.core_type<tc>, window_params = [{transform_indices = @transform_0, window_bounds = array<i64: 64, 784>}, {pipeline_mode = #tpu.pipeline_mode<synchronous>, transform_indices = @transform_1, window_bounds = array<i64: 784, 10>}, {pipeline_mode = #tpu.pipeline_mode<synchronous>, transform_indices = @transform_2, window_bounds = array<i64: 1, 10>}, {pipeline_mode = #tpu.pipeline_mode<synchronous>, transform_indices = @transform_3, window_bounds = array<i64: 1, 10>}, {transform_indices = @transform_4, window_bounds = array<i64: 1, 1>}, {transform_indices = @transform_5, window_bounds = array<i64: 64, 1>}]} {
    %c0 = arith.constant 0 : index
    %c0_0 = arith.constant 0 : index
    %0 = vector.load %arg1[%c0, %c0_0] : memref<64x784xf32, #tpu.memory_space<vmem>>, vector<64x784xf32>
    %1 = arith.truncf %0 : vector<64x784xf32> to vector<64x784xbf16>
    %c0_1 = arith.constant 0 : index
    %c0_2 = arith.constant 0 : index
    %2 = vector.load %arg2[%c0_1, %c0_2] : memref<784x10xbf16, #tpu.memory_space<vmem>>, vector<784x10xbf16>
    %cst = arith.constant dense<0.000000e+00> : vector<64x10xf32>
    %3 = tpu.matmul %1, %2, %cst {dimension_numbers = #tpu.dot_dimension_numbers<[1], [0], [0], [1], [0, 0, 1, 1], [], []>} : vector<64x784xbf16>, vector<784x10xbf16>, vector<64x10xf32> -> vector<64x10xf32>
    %c0_3 = arith.constant 0 : index
    %c0_4 = arith.constant 0 : index
    %4 = vector.load %arg3[%c0_3, %c0_4] : memref<1x10xf32, #tpu.memory_space<vmem>>, vector<1x10xf32>
    %5 = vector.broadcast %4 : vector<1x10xf32> to vector<64x10xf32>
    %6 = arith.addf %3, %5 : vector<64x10xf32>
    %cst_5 = arith.constant 0.000000e+00 : f32
    %7 = vector.broadcast %cst_5 : f32 to vector<64x10xf32>
    %8 = arith.maximumf %6, %7 : vector<64x10xf32>
    %c0_6 = arith.constant 0 : index
    %c0_7 = arith.constant 0 : index
    %9 = vector.load %arg4[%c0_6, %c0_7] : memref<1x10xf32, #tpu.memory_space<vmem>>, vector<1x10xf32>
    %10 = vector.broadcast %9 : vector<1x10xf32> to vector<64x10xf32>
    %11 = arith.mulf %8, %10 : vector<64x10xf32>
    %cst_8 = arith.constant dense<0.000000e+00> : vector<64xf32>
    %12 = vector.multi_reduction <add>, %11, %cst_8 [1] : vector<64x10xf32> to vector<64xf32>
    %13 = vector.shape_cast %12 : vector<64xf32> to vector<64x1xf32>
    %c0_9 = arith.constant 0 : index
    %c0_10 = arith.constant 0 : index
    %14 = memref.load %arg5[%c0_9, %c0_10] : memref<1x1xf32, #tpu.memory_space<smem>>
    %15 = vector.broadcast %14 : f32 to vector<64x1xf32>
    %16 = arith.addf %13, %15 : vector<64x1xf32>
    %c0_11 = arith.constant 0 : index
    %c0_12 = arith.constant 0 : index
    %17 = vector.load %arg6[%c0_11, %c0_12] : memref<64x1xf32, #tpu.memory_space<vmem>>, vector<64x1xf32>
    tpu.vector_store %arg6[%c0_11, %c0_12], %16 {strides = array<i32>} : memref<64x1xf32, #tpu.memory_space<vmem>>, vector<64x1xf32>,
    return
  }
  func.func @transform_0(%arg0: i32) -> (i32, i32) {
    %c0_i32 = arith.constant 0 : i32
    %c0_i32_0 = arith.constant 0 : i32
    return %arg0, %c0_i32 : i32, i32
  }
  func.func @transform_1(%arg0: i32) -> (i32, i32) {
    %c0_i32 = arith.constant 0 : i32
    %c0_i32_0 = arith.constant 0 : i32
    %c0_i32_1 = arith.constant 0 : i32
    return %c0_i32, %c0_i32_0 : i32, i32
  }
  func.func @transform_2(%arg0: i32) -> (i32, i32) {
    %c0_i32 = arith.constant 0 : i32
    %c0_i32_0 = arith.constant 0 : i32
    %c0_i32_1 = arith.constant 0 : i32
    return %c0_i32, %c0_i32_0 : i32, i32
  }
  func.func @transform_3(%arg0: i32) -> (i32, i32) {
    %c0_i32 = arith.constant 0 : i32
    %c0_i32_0 = arith.constant 0 : i32
    %c0_i32_1 = arith.constant 0 : i32
    return %c0_i32, %c0_i32_0 : i32, i32
  }
  func.func @transform_4(%arg0: i32) -> (i32, i32) {
    %c0_i32 = arith.constant 0 : i32
    %c0_i32_0 = arith.constant 0 : i32
    %c0_i32_1 = arith.constant 0 : i32
    return %c0_i32, %c0_i32_0 : i32, i32
  }
  func.func @transform_5(%arg0: i32) -> (i32, i32) {
    %c0_i32 = arith.constant 0 : i32
    %c0_i32_0 = arith.constant 0 : i32
    return %arg0, %c0_i32 : i32, i32
  }
}

</mosaic_0001>

<llo_original>
// kernel: simplenet_forward.1
$region0: #{simplenet_forward.1}
  #allocation0 [shape = 'u32[]', space=smem, size = 0x4, offset = 0x4, fixed_abs, tag = 'smem constant byte address 0x4 - core index']
  #allocation1 [shape = 'u32[144,128]{1,0:T(1,128)}', space=vmem, size = 0x12000, scoped, tag = 'internal scratch']
  #allocation2 [shape = 'f32[1,1]{1,0:T(1,128)S(6)}', space=smem, size = 0x200, scoped, tag = 'scoped memory for simplenet_forward.1']
  %s0 = inlined_call_operand.vmem [shape: f32[256,784], index: 0, kind: input, shape index: {}]
  %s1 = inlined_call_operand.vmem [shape: bf16[784,10], index: 1, kind: input, shape index: {}]
  %s2 = inlined_call_operand.vmem [shape: f32[1,10], index: 2, kind: input, shape index: {}]
  %s3 = inlined_call_operand.vmem [shape: f32[1,10], index: 3, kind: input, shape index: {}]
  %s4 = inlined_call_operand.<no memory space> [shape: f32[1,1], index: 4, kind: input, shape index: {}]
  %s5 = inlined_call_operand.vmem [shape: f32[256,1], index: 5, kind: output, shape index: {}]
  %s6 = sld [smem:[#allocation0]]
  $region53: #{simplenet_forward.1} parent=0
    _
  %s8 = ssub.s32 1, %s6
  %s9 = scalar_select 0, %s8, %s6
  %10 = sst [smem:[#allocation2]] %s4
  loop: start=0, step=1, limit=6
  $region2: #{simplenet_forward.1} parent=0 // loop_pre_header
    _
  $region3: #{simplenet_forward.1} parent=0 // loop_header
    %s12 = sphi 0, %s16
    %p13 = scmp.ge.s32.totalorder %s12, 6
    %s22 = sphi 0, %s24
    %s25 = sphi 0, %s22
    %s26 = sphi 0, %s25
    %s42 = sphi 0, %s26
    %s46 = sphi 0, %s46
    %s48 = sphi 0, %s46
    %s49 = sphi 0, %s48
    %s63 = sphi 0, %s49
    %s67 = sphi 0, %s67
    %s69 = sphi 0, %s67
    %s70 = sphi 0, %s69
    %s84 = sphi 0, %s70
    %s88 = sphi 0, %s88
    %s90 = sphi 0, %s88
    %s91 = sphi 0, %s90
    %s105 = sphi 0, %s91
    %s109 = sphi 0, %s109
    %s111 = sphi 0, %s109
    %s112 = sphi 0, %s111
    %s126 = sphi 0, %s112
    %s132 = sphi 0, %s134
    %s135 = sphi 0, %s132
    %s136 = sphi 0, %s135
    %s152 = sphi 0, %s136
  $region4: #{simplenet_forward.1} parent=0 // loop_header_branch
    %15 = sbr.rel (%p13) target = $region8
  $region5: #{simplenet_forward.1} parent=0 // loop_body
    %s17 = ssub.s32 %s12, 1
    %s18 = ssub.s32 %s12, 2
    %s19 = sadd.s32 %s12, 1
    %s20 = ssub.s32 %s12, %s19
    %p21 = scmp.eq.s32.totalorder %s20, 0
    %s23 = sadd.s32 %s22, 1
    %s24 = scalar_select %p21, %s22, %s23
    %p27 = pneg %p21
    %p28 = scmp.eq.s32.totalorder %s12, 3
    %p29 = por %p27, %p28
    %p30 = scmp.ne.s32.totalorder %s22, %s25
    %p31 = scmp.eq.s32.totalorder %s12, 0
    %p32 = por %p30, %p31
    %p33 = scmp.ne.s32.totalorder %s22, %s25
    %p34 = scmp.eq.s32.totalorder %s17, 3
    %p35 = por %p33, %p34
    %p36 = scmp.ne.s32.totalorder %s25, %s26
    %p37 = scmp.eq.s32.totalorder %s17, 0
    %p38 = por %p36, %p37
    %p39 = scmp.ne.s32.totalorder %s25, %s26
    %p40 = scmp.eq.s32.totalorder %s18, 3
    %p41 = por %p39, %p40
    %p43 = scmp.ne.s32.totalorder %s26, %s42
    %p44 = scmp.eq.s32.totalorder %s18, 0
    %p45 = por %p43, %p44
    %s47 = sadd.s32 %s46, 1
    %p50 = scmp.eq.s32.totalorder %s12, 3
    %p51 = scmp.ne.s32.totalorder %s46, %s48
    %p52 = scmp.eq.s32.totalorder %s12, 0
    %p53 = por %p51, %p52
    %p54 = scmp.ne.s32.totalorder %s46, %s48
    %p55 = scmp.eq.s32.totalorder %s17, 3
    %p56 = por %p54, %p55
    %p57 = scmp.ne.s32.totalorder %s48, %s49
    %p58 = scmp.eq.s32.totalorder %s17, 0
    %p59 = por %p57, %p58
    %p60 = scmp.ne.s32.totalorder %s48, %s49
    %p61 = scmp.eq.s32.totalorder %s18, 3
    %p62 = por %p60, %p61
    %p64 = scmp.ne.s32.totalorder %s49, %s63
    %p65 = scmp.eq.s32.totalorder %s18, 0
    %p66 = por %p64, %p65
    %s68 = sadd.s32 %s67, 1
    %p71 = scmp.eq.s32.totalorder %s12, 3
    %p72 = scmp.ne.s32.totalorder %s67, %s69
    %p73 = scmp.eq.s32.totalorder %s12, 0
    %p74 = por %p72, %p73
    %p75 = scmp.ne.s32.totalorder %s67, %s69
    %p76 = scmp.eq.s32.totalorder %s17, 3
    %p77 = por %p75, %p76
    %p78 = scmp.ne.s32.totalorder %s69, %s70
    %p79 = scmp.eq.s32.totalorder %s17, 0
    %p80 = por %p78, %p79
    %p81 = scmp.ne.s32.totalorder %s69, %s70
    %p82 = scmp.eq.s32.totalorder %s18, 3
    %p83 = por %p81, %p82
    %p85 = scmp.ne.s32.totalorder %s70, %s84
    %p86 = scmp.eq.s32.totalorder %s18, 0
    %p87 = por %p85, %p86
    %s89 = sadd.s32 %s88, 1
    %p92 = scmp.eq.s32.totalorder %s12, 3
    %p93 = scmp.ne.s32.totalorder %s88, %s90
    %p94 = scmp.eq.s32.totalorder %s12, 0
    %p95 = por %p93, %p94
    %p96 = scmp.ne.s32.totalorder %s88, %s90
    %p97 = scmp.eq.s32.totalorder %s17, 3
    %p98 = por %p96, %p97
    %p99 = scmp.ne.s32.totalorder %s90, %s91
    %p100 = scmp.eq.s32.totalorder %s17, 0
    %p101 = por %p99, %p100
    %p102 = scmp.ne.s32.totalorder %s90, %s91
    %p103 = scmp.eq.s32.totalorder %s18, 3
    %p104 = por %p102, %p103
    %p106 = scmp.ne.s32.totalorder %s91, %s105
    %p107 = scmp.eq.s32.totalorder %s18, 0
    %p108 = por %p106, %p107
    %s110 = sadd.s32 %s109, 1
    %p113 = scmp.eq.s32.totalorder %s12, 3
    %p114 = scmp.ne.s32.totalorder %s109, %s111
    %p115 = scmp.eq.s32.totalorder %s12, 0
    %p116 = por %p114, %p115
    %p117 = scmp.ne.s32.totalorder %s109, %s111
    %p118 = scmp.eq.s32.totalorder %s17, 3
    %p119 = por %p117, %p118
    %p120 = scmp.ne.s32.totalorder %s111, %s112
    %p121 = scmp.eq.s32.totalorder %s17, 0
    %p122 = por %p120, %p121
    %p123 = scmp.ne.s32.totalorder %s111, %s112
    %p124 = scmp.eq.s32.totalorder %s18, 3
    %p125 = por %p123, %p124
    %p127 = scmp.ne.s32.totalorder %s112, %s126
    %p128 = scmp.eq.s32.totalorder %s18, 0
    %p129 = por %p127, %p128
    %s130 = ssub.s32 %s12, %s19
    %p131 = scmp.eq.s32.totalorder %s130, 0
    %s133 = sadd.s32 %s132, 1
    %s134 = scalar_select %p131, %s132, %s133
    %p137 = pneg %p131
    %p138 = scmp.eq.s32.totalorder %s12, 3
    %p139 = por %p137, %p138
    %p140 = scmp.ne.s32.totalorder %s132, %s135
    %p141 = scmp.eq.s32.totalorder %s12, 0
    %p142 = por %p140, %p141
    %p143 = scmp.ne.s32.totalorder %s132, %s135
    %p144 = scmp.eq.s32.totalorder %s17, 3
    %p145 = por %p143, %p144
    %p146 = scmp.ne.s32.totalorder %s135, %s136
    %p147 = scmp.eq.s32.totalorder %s17, 0
    %p148 = por %p146, %p147
    %p149 = scmp.ne.s32.totalorder %s135, %s136
    %p150 = scmp.eq.s32.totalorder %s18, 3
    %p151 = por %p149, %p150
    %p153 = scmp.ne.s32.totalorder %s136, %s152
    %p154 = scmp.eq.s32.totalorder %s18, 0
    %p155 = por %p153, %p154
    %p156 = scmp.le.s32.totalorder 1, %s12
    %p157 = scmp.lt.s32.totalorder %s12, 5
    %p158 = pnand %p156, %p157
    %p159 = pneg %p158
    // Predicated region
    $region9: #{simplenet_forward.1} parent=5 // pred_check
      _
    $region10: #{simplenet_forward.1} parent=5 // pred_check_branch
      %161 = sbr.rel (%p158) target = $region12
    $region11: #{simplenet_forward.1} parent=5 // pred_region
      %s162 = ssub.s32 %s12, 1
      // Predicated region
      $region13: #{simplenet_forward.1} parent=11 // pred_check
        %p163 = pneg %p59
      $region14: #{simplenet_forward.1} parent=11 // pred_check_branch
        %165 = sbr.rel (%p163) target = $region16
      $region15: #{simplenet_forward.1} parent=11 // pred_region
        _
      $region16: #{simplenet_forward.1} parent=11 // pred_fallthru
        _
      // Predicated region
      $region17: #{simplenet_forward.1} parent=11 // pred_check
        %p166 = pneg %p80
      $region18: #{simplenet_forward.1} parent=11 // pred_check_branch
        %168 = sbr.rel (%p166) target = $region20
      $region19: #{simplenet_forward.1} parent=11 // pred_region
        _
      $region20: #{simplenet_forward.1} parent=11 // pred_fallthru
        _
      // Predicated region
      $region21: #{simplenet_forward.1} parent=11 // pred_check
        %p169 = pneg %p101
      $region22: #{simplenet_forward.1} parent=11 // pred_check_branch
        %171 = sbr.rel (%p169) target = $region24
      $region23: #{simplenet_forward.1} parent=11 // pred_region
        _
      $region24: #{simplenet_forward.1} parent=11 // pred_fallthru
        _
      // Predicated region
      $region25: #{simplenet_forward.1} parent=11 // pred_check
        %p172 = pneg %p122
      $region26: #{simplenet_forward.1} parent=11 // pred_check_branch
        %174 = sbr.rel (%p172) target = $region28
      $region27: #{simplenet_forward.1} parent=11 // pred_region
        _
      $region28: #{simplenet_forward.1} parent=11 // pred_fallthru
        _
    $region12: #{simplenet_forward.1} parent=5 // pred_fallthru
      _
    %p175 = scmp.lt.s32.totalorder %s12, 4
    // Predicated region
    $region29: #{simplenet_forward.1} parent=5 // pred_check
      %p176 = pneg %p175
    $region30: #{simplenet_forward.1} parent=5 // pred_check_branch
      %178 = sbr.rel (%p176) target = $region32
    $region31: #{simplenet_forward.1} parent=5 // pred_region
      // Predicated region
      $region33: #{simplenet_forward.1} parent=31 // pred_check
        %p179 = pneg %p32
      $region34: #{simplenet_forward.1} parent=31 // pred_check_branch
        %181 = sbr.rel (%p179) target = $region36
      $region35: #{simplenet_forward.1} parent=31 // pred_region
        %s182 = smul.u32 8, %s12
        %p183 = scmp.lt.s32.totalorder %s182, 31
        %s184 = scalar_select %p183, %s182, 31
        %s185 = smul.addr %s184, 7
        %s186 = smul.addr %s185, 8
        %s187 = scalar_lea.vmem %s0, %s186
        %s188 = smul.u32 8, %s12
      $region36: #{simplenet_forward.1} parent=31 // pred_fallthru
        _
    $region32: #{simplenet_forward.1} parent=5 // pred_fallthru
      _
    %p189 = scmp.le.s32.totalorder 1, %s12
    %p190 = scmp.lt.s32.totalorder %s12, 5
    %p191 = pnand %p189, %p190
    %p192 = pneg %p191
    // Predicated region
    $region37: #{simplenet_forward.1} parent=5 // pred_check
      _
    $region38: #{simplenet_forward.1} parent=5 // pred_check_branch
      %194 = sbr.rel (%p191) target = $region40
    $region39: #{simplenet_forward.1} parent=5 // pred_region
      %s195 = ssub.s32 %s12, 1
      %s196 = smul.u32 8, %s17
      %p197 = scmp.lt.s32.totalorder %s196, 31
      %s198 = scalar_select %p197, %s196, 31
      %s199 = smul.addr %s198, 7
      %s200 = smul.addr %s199, 8
      %s201 = scalar_lea.vmem %s0, %s200
      %p202 = pneg %p38
      %p203 = pneg %p35
      %p204 = pneg %p59
      %p205 = pneg %p56
      %p206 = pneg %p80
      %p207 = pneg %p77
      %p208 = pneg %p101
      %p209 = pneg %p98
      %p210 = pneg %p122
      %p211 = pneg %p119
      %p212 = pneg %p148
      %p213 = pneg %p145
      %s214 = smul.u32 8, %s17
      %p215 = scmp.lt.s32.totalorder %s214, 31
      %s216 = scalar_select %p215, %s214, 31
      %s217 = smul.addr %s216, 8
      %s218 = scalar_lea.vmem %s5, %s217
      %s219 = smul.u32 8, %s17
      %p220 = scmp.lt.s32.totalorder %s219, 31
      %s221 = scalar_select %p220, %s219, 31
      %s222 = smul.addr %s221, 7
      %s223 = smul.addr %s222, 8
      %s224 = scalar_lea.vmem %s0, %s223
      %s225 = smul.u32 8, %s17
      %s226 = smul.u32 8, %s17
      %p227 = scmp.lt.s32.totalorder %s226, 31
      %s228 = scalar_select %p227, %s226, 31
      %s229 = smul.addr %s228, 8
      %s230 = scalar_lea.vmem %s5, %s229
      %s231 = smul.u32 8, %s17
      %v233 = vld [vmem:[%s224] sm:$0xff]
      %v234 = vld [vmem:[%s224 + $0x8] sm:$0xff]
      %v235 = vld [vmem:[%s224 + $0x10] sm:$0xff]
      %v236 = vld [vmem:[%s224 + $0x18] sm:$0xff]
      %v237 = vld [vmem:[%s224 + $0x20] sm:$0xff]
      %v238 = vld [vmem:[%s224 + $0x28] sm:$0xff]
      %v239 = vld [vmem:[%s224 + $0x30] sm:$0xff]
      %v240 = vld [vmem:[%s224 + $0x38] sm:$0xff]
      %v241 = vld [vmem:[%s224 + $0x40] sm:$0xff]
      %v242 = vld [vmem:[%s224 + $0x48] sm:$0xff]
      %v243 = vld [vmem:[%s224 + $0x50] sm:$0xff]
      %v244 = vld [vmem:[%s224 + $0x58] sm:$0xff]
      %v245 = vld [vmem:[%s224 + $0x60] sm:$0xff]
      %v246 = vld [vmem:[%s224 + $0x68] sm:$0xff]
      %v247 = vld [vmem:[%s224 + $0x70] sm:$0xff]
      %v248 = vld [vmem:[%s224 + $0x78] sm:$0xff]
      %v249 = vld [vmem:[%s224 + $0x80] sm:$0xff]
      %v250 = vld [vmem:[%s224 + $0x88] sm:$0xff]
      %v251 = vld [vmem:[%s224 + $0x90] sm:$0xff]
      %v252 = vld [vmem:[%s224 + $0x98] sm:$0xff]
      %v253 = vld [vmem:[%s224 + $0xa0] sm:$0xff]
      %v254 = vld [vmem:[%s224 + $0xa8] sm:$0xff]
      %v255 = vld [vmem:[%s224 + $0xb0] sm:$0xff]
      %v256 = vld [vmem:[%s224 + $0xb8] sm:$0xff]
      %v257 = vld [vmem:[%s224 + $0xc0] sm:$0xff]
      %v258 = vld [vmem:[%s224 + $0xc8] sm:$0xff]
      %v259 = vld [vmem:[%s224 + $0xd0] sm:$0xff]
      %v260 = vld [vmem:[%s224 + $0xd8] sm:$0xff]
      %v261 = vld [vmem:[%s224 + $0xe0] sm:$0xff]
      %v262 = vld [vmem:[%s224 + $0xe8] sm:$0xff]
      %v263 = vld [vmem:[%s224 + $0xf0] sm:$0xff]
      %v264 = vld [vmem:[%s224 + $0xf8] sm:$0xff]
      %v265 = vld [vmem:[%s224 + $0x100] sm:$0xff]
      %v266 = vld [vmem:[%s224 + $0x108] sm:$0xff]
      %v267 = vld [vmem:[%s224 + $0x110] sm:$0xff]
      %v268 = vld [vmem:[%s224 + $0x118] sm:$0xff]
      %v269 = vld [vmem:[%s224 + $0x120] sm:$0xff]
      %v270 = vld [vmem:[%s224 + $0x128] sm:$0xff]
      %v271 = vld [vmem:[%s224 + $0x130] sm:$0xff]
      %v272 = vld [vmem:[%s224 + $0x138] sm:$0xff]
      %v273 = vld [vmem:[%s224 + $0x140] sm:$0xff]
      %v274 = vld [vmem:[%s224 + $0x148] sm:$0xff]
      %v275 = vld [vmem:[%s224 + $0x150] sm:$0xff]
      %v276 = vld [vmem:[%s224 + $0x158] sm:$0xff]
      %v277 = vld [vmem:[%s224 + $0x160] sm:$0xff]
      %v278 = vld [vmem:[%s224 + $0x168] sm:$0xff]
      %v279 = vld [vmem:[%s224 + $0x170] sm:$0xff]
      %v280 = vld [vmem:[%s224 + $0x178] sm:$0xff]
      %v281 = vld [vmem:[%s224 + $0x180] sm:$0xff]
      %v282 = vld [vmem:[%s224 + $0x188] sm:$0xff]
      %v283 = vld [vmem:[%s224 + $0x190] sm:$0xff]
      %v284 = vld [vmem:[%s224 + $0x198] sm:$0xff]
      %v285 = vld [vmem:[%s224 + $0x1a0] sm:$0xff]
      %v286 = vld [vmem:[%s224 + $0x1a8] sm:$0xff]
      %v287 = vld [vmem:[%s224 + $0x1b0] sm:$0xff]
      %v288 = vld [vmem:[%s224 + $0x1b8] sm:$0xff]
      %v289 = vpack.c.bf16 %v240, %v233
      %v290 = vpack.c.bf16 %v241, %v234
      %v291 = vpack.c.bf16 %v242, %v235
      %v292 = vpack.c.bf16 %v243, %v236
      %v293 = vpack.c.bf16 %v244, %v237
      %v294 = vpack.c.bf16 %v245, %v238
      %v295 = vpack.c.bf16 %v246, %v239
      %v296 = vpack.c.bf16 %v254, %v247
      %v297 = vpack.c.bf16 %v255, %v248
      %v298 = vpack.c.bf16 %v256, %v249
      %v299 = vpack.c.bf16 %v257, %v250
      %v300 = vpack.c.bf16 %v258, %v251
      %v301 = vpack.c.bf16 %v259, %v252
      %v302 = vpack.c.bf16 %v260, %v253
      %v303 = vpack.c.bf16 %v268, %v261
      %v304 = vpack.c.bf16 %v269, %v262
      %v305 = vpack.c.bf16 %v270, %v263
      %v306 = vpack.c.bf16 %v271, %v264
      %v307 = vpack.c.bf16 %v272, %v265
      %v308 = vpack.c.bf16 %v273, %v266
      %v309 = vpack.c.bf16 %v274, %v267
      %v310 = vpack.c.bf16 %v282, %v275
      %v311 = vpack.c.bf16 %v283, %v276
      %v312 = vpack.c.bf16 %v284, %v277
      %v313 = vpack.c.bf16 %v285, %v278
      %v314 = vpack.c.bf16 %v286, %v279
      %v315 = vpack.c.bf16 %v287, %v280
      %v316 = vpack.c.bf16 %v288, %v281
      %v317 = vld [vmem:[%s1] sm:$0xf]
      %v318 = vld [vmem:[%s1 + $0x4] sm:$0xf]
      %v319 = vld [vmem:[%s1 + $0x8] sm:$0xf]
      %v320 = vld [vmem:[%s1 + $0xc] sm:$0xf]
      %v321 = vld [vmem:[%s1 + $0x10] sm:$0xf]
      %v322 = vld [vmem:[%s1 + $0x14] sm:$0xf]
      %v323 = vld [vmem:[%s1 + $0x18] sm:$0xf]
      %v324 = vld [vmem:[%s1 + $0x1c] sm:$0xf]
      %v325 = vld [vmem:[%s1 + $0x20] sm:$0xf]
      %v326 = vld [vmem:[%s1 + $0x24] sm:$0xf]
      %v327 = vld [vmem:[%s1 + $0x28] sm:$0xf]
      %v328 = vld [vmem:[%s1 + $0x2c] sm:$0xf]
      %v329 = vld [vmem:[%s1 + $0x30] sm:$0xf]
      %v330 = vld [vmem:[%s1 + $0x34] sm:$0xf]
      %v331 = vld [vmem:[%s1 + $0x38] sm:$0xf]
      %v332 = vld [vmem:[%s1 + $0x3c] sm:$0xf]
      %v333 = vld [vmem:[%s1 + $0x40] sm:$0xf]
      %v334 = vld [vmem:[%s1 + $0x44] sm:$0xf]
      %v335 = vld [vmem:[%s1 + $0x48] sm:$0xf]
      %v336 = vld [vmem:[%s1 + $0x4c] sm:$0xf]
      %v337 = vld [vmem:[%s1 + $0x50] sm:$0xf]
      %v338 = vld [vmem:[%s1 + $0x54] sm:$0xf]
      %v339 = vld [vmem:[%s1 + $0x58] sm:$0xf]
      %v340 = vld [vmem:[%s1 + $0x5c] sm:$0xf]
      %v341 = vld [vmem:[%s1 + $0x60] sm:$0xf]
      %v342 = vld [vmem:[%s1 + $0x64] sm:$0xf]
      %v343 = vld [vmem:[%s1 + $0x68] sm:$0xf]
      %v344 = vld [vmem:[%s1 + $0x6c] sm:$0xf]
      %v345 = vld [vmem:[%s1 + $0x70] sm:$0xf]
      %v346 = vld [vmem:[%s1 + $0x74] sm:$0xf]
      %v347 = vld [vmem:[%s1 + $0x78] sm:$0xf]
      %v348 = vld [vmem:[%s1 + $0x7c] sm:$0xf]
      %v349 = vld [vmem:[%s1 + $0x80] sm:$0xf]
      %v350 = vld [vmem:[%s1 + $0x84] sm:$0xf]
      %v351 = vld [vmem:[%s1 + $0x88] sm:$0xf]
      %v352 = vld [vmem:[%s1 + $0x8c] sm:$0xf]
      %v353 = vld [vmem:[%s1 + $0x90] sm:$0xf]
      %v354 = vld [vmem:[%s1 + $0x94] sm:$0xf]
      %v355 = vld [vmem:[%s1 + $0x98] sm:$0xf]
      %v356 = vld [vmem:[%s1 + $0x9c] sm:$0xf]
      %v357 = vld [vmem:[%s1 + $0xa0] sm:$0xf]
      %v358 = vld [vmem:[%s1 + $0xa4] sm:$0xf]
      %v359 = vld [vmem:[%s1 + $0xa8] sm:$0xf]
      %v360 = vld [vmem:[%s1 + $0xac] sm:$0xf]
      %v361 = vld [vmem:[%s1 + $0xb0] sm:$0xf]
      %v362 = vld [vmem:[%s1 + $0xb4] sm:$0xf]
      %v363 = vld [vmem:[%s1 + $0xb8] sm:$0xf]
      %v364 = vld [vmem:[%s1 + $0xbc] sm:$0xf]
      %v365 = vld [vmem:[%s1 + $0xc0] sm:$0xf]
      %v366 = vld [vmem:[%s1 + $0xc4] sm:$0xf]
      %v367 = vld [vmem:[%s1 + $0xc8] sm:$0xf]
      %v368 = vld [vmem:[%s1 + $0xcc] sm:$0xf]
      %v369 = vld [vmem:[%s1 + $0xd0] sm:$0xf]
      %v370 = vld [vmem:[%s1 + $0xd4] sm:$0xf]
      %v371 = vld [vmem:[%s1 + $0xd8] sm:$0xf]
      %v372 = vld [vmem:[%s1 + $0xdc] sm:$0xf]
      %v373 = vld [vmem:[%s1 + $0xe0] sm:$0xf]
      %v374 = vld [vmem:[%s1 + $0xe4] sm:$0xf]
      %v375 = vld [vmem:[%s1 + $0xe8] sm:$0xf]
      %v376 = vld [vmem:[%s1 + $0xec] sm:$0xf]
      %v377 = vld [vmem:[%s1 + $0xf0] sm:$0xf]
      %v378 = vld [vmem:[%s1 + $0xf4] sm:$0xf]
      %v379 = vld [vmem:[%s1 + $0xf8] sm:$0xf]
      %v380 = vld [vmem:[%s1 + $0xfc] sm:$0xf]
      %v381 = vld [vmem:[%s1 + $0x100] sm:$0xf]
      %v382 = vld [vmem:[%s1 + $0x104] sm:$0xf]
      %v383 = vld [vmem:[%s1 + $0x108] sm:$0xf]
      %v384 = vld [vmem:[%s1 + $0x10c] sm:$0xf]
      %v385 = vld [vmem:[%s1 + $0x110] sm:$0xf]
      %v386 = vld [vmem:[%s1 + $0x114] sm:$0xf]
      %v387 = vld [vmem:[%s1 + $0x118] sm:$0xf]
      %v388 = vld [vmem:[%s1 + $0x11c] sm:$0xf]
      %v389 = vld [vmem:[%s1 + $0x120] sm:$0xf]
      %v390 = vld [vmem:[%s1 + $0x124] sm:$0xf]
      %v391 = vld [vmem:[%s1 + $0x128] sm:$0xf]
      %v392 = vld [vmem:[%s1 + $0x12c] sm:$0xf]
      %v393 = vld [vmem:[%s1 + $0x130] sm:$0xf]
      %v394 = vld [vmem:[%s1 + $0x134] sm:$0xf]
      %v395 = vld [vmem:[%s1 + $0x138] sm:$0xf]
      %v396 = vld [vmem:[%s1 + $0x13c] sm:$0xf]
      %v397 = vld [vmem:[%s1 + $0x140] sm:$0xf]
      %v398 = vld [vmem:[%s1 + $0x144] sm:$0xf]
      %v399 = vld [vmem:[%s1 + $0x148] sm:$0xf]
      %v400 = vld [vmem:[%s1 + $0x14c] sm:$0xf]
      %v401 = vld [vmem:[%s1 + $0x150] sm:$0xf]
      %v402 = vld [vmem:[%s1 + $0x154] sm:$0xf]
      %v403 = vld [vmem:[%s1 + $0x158] sm:$0xf]
      %v404 = vld [vmem:[%s1 + $0x15c] sm:$0xf]
      %v405 = vld [vmem:[%s1 + $0x160] sm:$0xf]
      %v406 = vld [vmem:[%s1 + $0x164] sm:$0xf]
      %v407 = vld [vmem:[%s1 + $0x168] sm:$0xf]
      %v408 = vld [vmem:[%s1 + $0x16c] sm:$0xf]
      %v409 = vld [vmem:[%s1 + $0x170] sm:$0xf]
      %v410 = vld [vmem:[%s1 + $0x174] sm:$0xf]
      %v411 = vld [vmem:[%s1 + $0x178] sm:$0xf]
      %v412 = vld [vmem:[%s1 + $0x17c] sm:$0xf]
      %v413 = vld [vmem:[%s1 + $0x180] sm:$0xf]
      %v414 = vld [vmem:[%s1 + $0x184] sm:$0xf]
      %v415 = vld [vmem:[%s2] sm:$0x1]
      %v417 = vlaneseq
      %v418 = vshrl.u32 %v417, 7
      %v419 = vsub.s32 0, %v418
      %v420 = vrot.slane %v415, %v419
      %v520 = vunpack.c.l.b16 %v317
      %v521 = vunpack.c.l.b16 %v318
      %v522 = vunpack.c.l.b16 %v319
      %v523 = vunpack.c.l.b16 %v320
      %v524 = vunpack.c.l.b16 %v321
      %v525 = vunpack.c.l.b16 %v322
      %v526 = vunpack.c.l.b16 %v323
      %v527 = vunpack.c.l.b16 %v324
      %v528 = vunpack.c.l.b16 %v325
      %v529 = vunpack.c.l.b16 %v326
      %v530 = vunpack.c.l.b16 %v327
      %v531 = vunpack.c.l.b16 %v328
      %v532 = vunpack.c.l.b16 %v329
      %v533 = vunpack.c.l.b16 %v330
      %v534 = vunpack.c.l.b16 %v331
      %v535 = vunpack.c.l.b16 %v332
      %v536 = vunpack.c.l.b16 %v333
      %v537 = vunpack.c.l.b16 %v334
      %v538 = vunpack.c.l.b16 %v335
      %v539 = vunpack.c.l.b16 %v336
      %v540 = vunpack.c.l.b16 %v337
      %v541 = vunpack.c.l.b16 %v338
      %v542 = vunpack.c.l.b16 %v339
      %v543 = vunpack.c.l.b16 %v340
      %v544 = vunpack.c.l.b16 %v341
      %v545 = vunpack.c.l.b16 %v342
      %v546 = vunpack.c.l.b16 %v343
      %v547 = vunpack.c.l.b16 %v344
      %v548 = vunpack.c.l.b16 %v345
      %v549 = vunpack.c.l.b16 %v346
      %v550 = vunpack.c.l.b16 %v347
      %v551 = vunpack.c.l.b16 %v348
      %v552 = vunpack.c.l.b16 %v349
      %v553 = vunpack.c.l.b16 %v350
      %v554 = vunpack.c.l.b16 %v351
      %v555 = vunpack.c.l.b16 %v352
      %v556 = vunpack.c.l.b16 %v353
      %v557 = vunpack.c.l.b16 %v354
      %v558 = vunpack.c.l.b16 %v355
      %v559 = vunpack.c.l.b16 %v356
      %v560 = vunpack.c.l.b16 %v357
      %v561 = vunpack.c.l.b16 %v358
      %v562 = vunpack.c.l.b16 %v359
      %v563 = vunpack.c.l.b16 %v360
      %v564 = vunpack.c.l.b16 %v361
      %v565 = vunpack.c.l.b16 %v362
      %v566 = vunpack.c.l.b16 %v363
      %v567 = vunpack.c.l.b16 %v364
      %v568 = vunpack.c.l.b16 %v365
      %v569 = vunpack.c.l.b16 %v366
      %v570 = vunpack.c.l.b16 %v367
      %v571 = vunpack.c.l.b16 %v368
      %v572 = vunpack.c.l.b16 %v369
      %v573 = vunpack.c.l.b16 %v370
      %v574 = vunpack.c.l.b16 %v371
      %v575 = vunpack.c.l.b16 %v372
      %v576 = vunpack.c.l.b16 %v373
      %v577 = vunpack.c.l.b16 %v374
      %v578 = vunpack.c.l.b16 %v375
      %v579 = vunpack.c.l.b16 %v376
      %v580 = vunpack.c.l.b16 %v377
      %v581 = vunpack.c.l.b16 %v378
      %v582 = vunpack.c.l.b16 %v379
      %v583 = vunpack.c.l.b16 %v380
      %v584 = vunpack.c.l.b16 %v381
      %v585 = vunpack.c.l.b16 %v382
      %v586 = vunpack.c.l.b16 %v383
      %v587 = vunpack.c.l.b16 %v384
      %v588 = vunpack.c.l.b16 %v385
      %v589 = vunpack.c.l.b16 %v386
      %v590 = vunpack.c.l.b16 %v387
      %v591 = vunpack.c.l.b16 %v388
      %v592 = vunpack.c.l.b16 %v389
      %v593 = vunpack.c.l.b16 %v390
      %v594 = vunpack.c.l.b16 %v391
      %v595 = vunpack.c.l.b16 %v392
      %v596 = vunpack.c.l.b16 %v393
      %v597 = vunpack.c.l.b16 %v394
      %v598 = vunpack.c.l.b16 %v395
      %v599 = vunpack.c.l.b16 %v396
      %v600 = vunpack.c.l.b16 %v397
      %v601 = vunpack.c.l.b16 %v398
      %v602 = vunpack.c.l.b16 %v399
      %v603 = vunpack.c.l.b16 %v400
      %v604 = vunpack.c.l.b16 %v401
      %v605 = vunpack.c.l.b16 %v402
      %v606 = vunpack.c.l.b16 %v403
      %v607 = vunpack.c.l.b16 %v404
      %v608 = vunpack.c.l.b16 %v405
      %v609 = vunpack.c.l.b16 %v406
      %v610 = vunpack.c.l.b16 %v407
      %v611 = vunpack.c.l.b16 %v408
      %v612 = vunpack.c.l.b16 %v409
      %v613 = vunpack.c.l.b16 %v410
      %v614 = vunpack.c.l.b16 %v411
      %v615 = vunpack.c.l.b16 %v412
      %v616 = vunpack.c.l.b16 %v413
      %v617 = vunpack.c.l.b16 %v414
      %v618 = vpack.c.b16 %v521, %v520
      %v619 = vpack.c.b16 %v523, %v522
      %v620 = vpack.c.b16 %v525, %v524
      %v621 = vpack.c.b16 %v527, %v526
      %v622 = vpack.c.b16 %v529, %v528
      %v623 = vpack.c.b16 %v531, %v530
      %v624 = vpack.c.b16 %v533, %v532
      %v625 = vpack.c.b16 %v535, %v534
      %v626 = vpack.c.b16 %v537, %v536
      %v627 = vpack.c.b16 %v539, %v538
      %v628 = vpack.c.b16 %v541, %v540
      %v629 = vpack.c.b16 %v543, %v542
      %v630 = vpack.c.b16 %v545, %v544
      %v631 = vpack.c.b16 %v547, %v546
      %v632 = vpack.c.b16 %v549, %v548
      %v633 = vpack.c.b16 %v551, %v550
      %v634 = vpack.c.b16 %v553, %v552
      %v635 = vpack.c.b16 %v555, %v554
      %v636 = vpack.c.b16 %v557, %v556
      %v637 = vpack.c.b16 %v559, %v558
      %v638 = vpack.c.b16 %v561, %v560
      %v639 = vpack.c.b16 %v563, %v562
      %v640 = vpack.c.b16 %v565, %v564
      %v641 = vpack.c.b16 %v567, %v566
      %v642 = vpack.c.b16 %v569, %v568
      %v643 = vpack.c.b16 %v571, %v570
      %v644 = vpack.c.b16 %v573, %v572
      %v645 = vpack.c.b16 %v575, %v574
      %v646 = vpack.c.b16 %v577, %v576
      %v647 = vpack.c.b16 %v579, %v578
      %v648 = vpack.c.b16 %v581, %v580
      %v649 = vpack.c.b16 %v583, %v582
      %v650 = vpack.c.b16 %v585, %v584
      %v651 = vpack.c.b16 %v587, %v586
      %v652 = vpack.c.b16 %v589, %v588
      %v653 = vpack.c.b16 %v591, %v590
      %v654 = vpack.c.b16 %v593, %v592
      %v655 = vpack.c.b16 %v595, %v594
      %v656 = vpack.c.b16 %v597, %v596
      %v657 = vpack.c.b16 %v599, %v598
      %v658 = vpack.c.b16 %v601, %v600
      %v659 = vpack.c.b16 %v603, %v602
      %v660 = vpack.c.b16 %v605, %v604
      %v661 = vpack.c.b16 %v607, %v606
      %v662 = vpack.c.b16 %v609, %v608
      %v663 = vpack.c.b16 %v611, %v610
      %v664 = vpack.c.b16 %v613, %v612
      %v665 = vpack.c.b16 %v615, %v614
      %v666 = vpack.c.b16 %v617, %v616
      %vm716 = vcmask 130048
      %v718 = vsel %vm716, %v295, 0
      %v721 = vsel %vm716, %v302, 0
      %v724 = vsel %vm716, %v309, 0
      %v727 = vsel %vm716, %v316, 0
      %729 = vmatprep.subr.bf16.mxu0 0
      %730 = vmatpush1.bf16.msra.mxu0 %v618
      %731 = vmatprep.subr.bf16.mxu0 0
      %732 = vmatpush1.bf16.msra.mxu0 %v619
      %733 = vmatprep.subr.bf16.mxu0 0
      %734 = vmatpush1.bf16.msra.mxu0 %v620
      %735 = vmatprep.subr.bf16.mxu0 0
      %736 = vmatpush1.bf16.msra.mxu0 %v621
      %737 = vmatprep.subr.bf16.mxu0 0
      %738 = vmatpush1.bf16.msra.mxu0 %v622
      %739 = vmatprep.subr.bf16.mxu0 0
      %740 = vmatpush1.bf16.msra.mxu0 %v623
      %741 = vmatprep.subr.bf16.mxu0 0
      %742 = vmatpush1.bf16.msra.mxu0 %v624
      %743 = vmatprep.subr.bf16.mxu0 0
      %744 = vmatpush1.bf16.msra.mxu0 %v625
      %745 = vmatprep.subr.bf16.mxu0 0
      %746 = vmatpush1.bf16.msra.mxu0 %v626
      %747 = vmatprep.subr.bf16.mxu0 0
      %748 = vmatpush1.bf16.msra.mxu0 %v627
      %749 = vmatprep.subr.bf16.mxu0 0
      %750 = vmatpush1.bf16.msra.mxu0 %v628
      %751 = vmatprep.subr.bf16.mxu0 0
      %752 = vmatpush1.bf16.msra.mxu0 %v629
      %753 = vmatprep.subr.bf16.mxu0 0
      %754 = vmatpush1.bf16.msra.mxu0 %v630
      %755 = vmatprep.subr.bf16.mxu0 0
      %756 = vmatpush1.bf16.msra.mxu0 %v631
      %757 = vmatprep.subr.bf16.mxu0 0
      %758 = vmatpush1.bf16.msra.mxu0 %v632
      %759 = vmatprep.subr.bf16.mxu0 0
      %760 = vmatpush1.bf16.msra.mxu0 %v633
      %761 = vmatprep.mubr.bf16.mxu0 %v290
      %762 = vmatmul.mubr.bf16.gmra.mrb[0].mxu0 %v289
      %v763 = vpop.f32.mrb[0].mxu0
      %v764 = vadd.f32 %v420, %v763
      %v765 = vpop.f32.mrb[0].mxu0
      %v766 = vpop.f32.mrb[0].mxu0
      %v767 = vadd.f32 %v420, %v766
      %v768 = vpop.f32.mrb[0].mxu0
      %769 = vmatprep.mubr.bf16.mxu0 %v297
      %770 = vmatmul.mubr.bf16.gmra.mrb[0].mxu0 %v296
      %v771 = vpop.f32.mrb[0].mxu0
      %v772 = vadd.f32 %v420, %v771
      %v773 = vpop.f32.mrb[0].mxu0
      %v774 = vpop.f32.mrb[0].mxu0
      %v775 = vadd.f32 %v420, %v774
      %v776 = vpop.f32.mrb[0].mxu0
      %777 = vmatprep.mubr.bf16.mxu0 %v304
      %778 = vmatmul.mubr.bf16.gmra.mrb[0].mxu0 %v303
      %v779 = vpop.f32.mrb[0].mxu0
      %v780 = vadd.f32 %v420, %v779
      %v781 = vpop.f32.mrb[0].mxu0
      %v782 = vpop.f32.mrb[0].mxu0
      %v783 = vadd.f32 %v420, %v782
      %v784 = vpop.f32.mrb[0].mxu0
      %785 = vmatprep.mubr.bf16.mxu0 %v311
      %786 = vmatmul.mubr.bf16.gmra.mrb[0].mxu0 %v310
      %v787 = vpop.f32.mrb[0].mxu0
      %v788 = vadd.f32 %v420, %v787
      %v789 = vpop.f32.mrb[0].mxu0
      %v790 = vpop.f32.mrb[0].mxu0
      %v791 = vadd.f32 %v420, %v790
      %v792 = vpop.f32.mrb[0].mxu0
      %793 = vdwg.mxu0
      %794 = vmatprep.subr.bf16.mxu0 0
      %795 = vmatpush1.bf16.msra.mxu0 %v634
      %796 = vmatprep.subr.bf16.mxu0 0
      %797 = vmatpush1.bf16.msra.mxu0 %v635
      %798 = vmatprep.subr.bf16.mxu0 0
      %799 = vmatpush1.bf16.msra.mxu0 %v636
      %800 = vmatprep.subr.bf16.mxu0 0
      %801 = vmatpush1.bf16.msra.mxu0 %v637
      %802 = vmatprep.subr.bf16.mxu0 0
      %803 = vmatpush1.bf16.msra.mxu0 %v638
      %804 = vmatprep.subr.bf16.mxu0 0
      %805 = vmatpush1.bf16.msra.mxu0 %v639
      %806 = vmatprep.subr.bf16.mxu0 0
      %807 = vmatpush1.bf16.msra.mxu0 %v640
      %808 = vmatprep.subr.bf16.mxu0 0
      %809 = vmatpush1.bf16.msra.mxu0 %v641
      %810 = vmatprep.subr.bf16.mxu0 0
      %811 = vmatpush1.bf16.msra.mxu0 %v642
      %812 = vmatprep.subr.bf16.mxu0 0
      %813 = vmatpush1.bf16.msra.mxu0 %v643
      %814 = vmatprep.subr.bf16.mxu0 0
      %815 = vmatpush1.bf16.msra.mxu0 %v644
      %816 = vmatprep.subr.bf16.mxu0 0
      %817 = vmatpush1.bf16.msra.mxu0 %v645
      %818 = vmatprep.subr.bf16.mxu0 0
      %819 = vmatpush1.bf16.msra.mxu0 %v646
      %820 = vmatprep.subr.bf16.mxu0 0
      %821 = vmatpush1.bf16.msra.mxu0 %v647
      %822 = vmatprep.subr.bf16.mxu0 0
      %823 = vmatpush1.bf16.msra.mxu0 %v648
      %824 = vmatprep.subr.bf16.mxu0 0
      %825 = vmatpush1.bf16.msra.mxu0 %v649
      %826 = vmatprep.mubr.bf16.mxu0 %v292
      %827 = vmatmul.mubr.bf16.gmra.mrb[0].mxu0 %v291
      %v828 = vpop.f32.mrb[0].mxu0
      %v829 = vadd.f32 %v764, %v828
      %v830 = vpop.f32.mrb[0].mxu0
      %v831 = vpop.f32.mrb[0].mxu0
      %v832 = vadd.f32 %v767, %v831
      %v833 = vpop.f32.mrb[0].mxu0
      %834 = vmatprep.mubr.bf16.mxu0 %v299
      %835 = vmatmul.mubr.bf16.gmra.mrb[0].mxu0 %v298
      %v836 = vpop.f32.mrb[0].mxu0
      %v837 = vadd.f32 %v772, %v836
      %v838 = vpop.f32.mrb[0].mxu0
      %v839 = vpop.f32.mrb[0].mxu0
      %v840 = vadd.f32 %v775, %v839
      %v841 = vpop.f32.mrb[0].mxu0
      %842 = vmatprep.mubr.bf16.mxu0 %v306
      %843 = vmatmul.mubr.bf16.gmra.mrb[0].mxu0 %v305
      %v844 = vpop.f32.mrb[0].mxu0
      %v845 = vadd.f32 %v780, %v844
      %v846 = vpop.f32.mrb[0].mxu0
      %v847 = vpop.f32.mrb[0].mxu0
      %v848 = vadd.f32 %v783, %v847
      %v849 = vpop.f32.mrb[0].mxu0
      %850 = vmatprep.mubr.bf16.mxu0 %v313
      %851 = vmatmul.mubr.bf16.gmra.mrb[0].mxu0 %v312
      %v852 = vpop.f32.mrb[0].mxu0
      %v853 = vadd.f32 %v788, %v852
      %v854 = vpop.f32.mrb[0].mxu0
      %v855 = vpop.f32.mrb[0].mxu0
      %v856 = vadd.f32 %v791, %v855
      %v857 = vpop.f32.mrb[0].mxu0
      %858 = vdwg.mxu0
      %859 = vmatprep.subr.bf16.mxu0 0
      %860 = vmatpush1.bf16.msra.mxu0 %v650
      %861 = vmatprep.subr.bf16.mxu0 0
      %862 = vmatpush1.bf16.msra.mxu0 %v651
      %863 = vmatprep.subr.bf16.mxu0 0
      %864 = vmatpush1.bf16.msra.mxu0 %v652
      %865 = vmatprep.subr.bf16.mxu0 0
      %866 = vmatpush1.bf16.msra.mxu0 %v653
      %867 = vmatprep.subr.bf16.mxu0 0
      %868 = vmatpush1.bf16.msra.mxu0 %v654
      %869 = vmatprep.subr.bf16.mxu0 0
      %870 = vmatpush1.bf16.msra.mxu0 %v655
      %871 = vmatprep.subr.bf16.mxu0 0
      %872 = vmatpush1.bf16.msra.mxu0 %v656
      %873 = vmatprep.subr.bf16.mxu0 0
      %874 = vmatpush1.bf16.msra.mxu0 %v657
      %875 = vmatprep.subr.bf16.mxu0 0
      %876 = vmatpush1.bf16.msra.mxu0 %v658
      %877 = vmatprep.subr.bf16.mxu0 0
      %878 = vmatpush1.bf16.msra.mxu0 %v659
      %879 = vmatprep.subr.bf16.mxu0 0
      %880 = vmatpush1.bf16.msra.mxu0 %v660
      %881 = vmatprep.subr.bf16.mxu0 0
      %882 = vmatpush1.bf16.msra.mxu0 %v661
      %883 = vmatprep.subr.bf16.mxu0 0
      %884 = vmatpush1.bf16.msra.mxu0 %v662
      %885 = vmatprep.subr.bf16.mxu0 0
      %886 = vmatpush1.bf16.msra.mxu0 %v663
      %887 = vmatprep.subr.bf16.mxu0 0
      %888 = vmatpush1.bf16.msra.mxu0 %v664
      %889 = vmatprep.subr.bf16.mxu0 0
      %890 = vmatpush1.bf16.msra.mxu0 %v665
      %891 = vmatprep.mubr.bf16.mxu0 %v294
      %892 = vmatmul.mubr.bf16.gmra.mrb[0].mxu0 %v293
      %v893 = vpop.f32.mrb[0].mxu0
      %v894 = vadd.f32 %v829, %v893
      %v895 = vpop.f32.mrb[0].mxu0
      %v896 = vpop.f32.mrb[0].mxu0
      %v897 = vadd.f32 %v832, %v896
      %v898 = vpop.f32.mrb[0].mxu0
      %899 = vmatprep.mubr.bf16.mxu0 %v301
      %900 = vmatmul.mubr.bf16.gmra.mrb[0].mxu0 %v300
      %v901 = vpop.f32.mrb[0].mxu0
      %v902 = vadd.f32 %v837, %v901
      %v903 = vpop.f32.mrb[0].mxu0
      %v904 = vpop.f32.mrb[0].mxu0
      %v905 = vadd.f32 %v840, %v904
      %v906 = vpop.f32.mrb[0].mxu0
      %907 = vmatprep.mubr.bf16.mxu0 %v308
      %908 = vmatmul.mubr.bf16.gmra.mrb[0].mxu0 %v307
      %v909 = vpop.f32.mrb[0].mxu0
      %v910 = vadd.f32 %v845, %v909
      %v911 = vpop.f32.mrb[0].mxu0
      %v912 = vpop.f32.mrb[0].mxu0
      %v913 = vadd.f32 %v848, %v912
      %v914 = vpop.f32.mrb[0].mxu0
      %915 = vmatprep.mubr.bf16.mxu0 %v315
      %916 = vmatmul.mubr.bf16.gmra.mrb[0].mxu0 %v314
      %v917 = vpop.f32.mrb[0].mxu0
      %v918 = vadd.f32 %v853, %v917
      %v919 = vpop.f32.mrb[0].mxu0
      %v920 = vpop.f32.mrb[0].mxu0
      %v921 = vadd.f32 %v856, %v920
      %v922 = vpop.f32.mrb[0].mxu0
      %923 = vdwg.mxu0
      %924 = vmatprep.subr.bf16.mxu0 0
      %925 = vmatpush1.bf16.msra.mxu0 %v666
      %926 = vmatprep.subr.bf16.mxu0 0
      %927 = vmatpush1.bf16.msra.mxu0 0
      %928 = vmatprep.subr.bf16.mxu0 0
      %929 = vmatpush1.bf16.msra.mxu0 0
      %930 = vmatprep.subr.bf16.mxu0 0
      %931 = vmatpush1.bf16.msra.mxu0 0
      %932 = vmatprep.subr.bf16.mxu0 0
      %933 = vmatpush1.bf16.msra.mxu0 0
      %934 = vmatprep.subr.bf16.mxu0 0
      %935 = vmatpush1.bf16.msra.mxu0 0
      %936 = vmatprep.subr.bf16.mxu0 0
      %937 = vmatpush1.bf16.msra.mxu0 0
      %938 = vmatprep.subr.bf16.mxu0 0
      %939 = vmatpush1.bf16.msra.mxu0 0
      %940 = vmatprep.subr.bf16.mxu0 0
      %941 = vmatpush1.bf16.msra.mxu0 0
      %942 = vmatprep.subr.bf16.mxu0 0
      %943 = vmatpush1.bf16.msra.mxu0 0
      %944 = vmatprep.subr.bf16.mxu0 0
      %945 = vmatpush1.bf16.msra.mxu0 0
      %946 = vmatprep.subr.bf16.mxu0 0
      %947 = vmatpush1.bf16.msra.mxu0 0
      %948 = vmatprep.subr.bf16.mxu0 0
      %949 = vmatpush1.bf16.msra.mxu0 0
      %950 = vmatprep.subr.bf16.mxu0 0
      %951 = vmatpush1.bf16.msra.mxu0 0
      %952 = vmatprep.subr.bf16.mxu0 0
      %953 = vmatpush1.bf16.msra.mxu0 0
      %954 = vmatprep.subr.bf16.mxu0 0
      %955 = vmatpush1.bf16.msra.mxu0 0
      %956 = vmatprep.mubr.bf16.mxu0 0
      %957 = vmatmul.mubr.bf16.gmra.mrb[0].mxu0 %v718
      %v958 = vpop.f32.mrb[0].mxu0
      %v959 = vadd.f32 %v894, %v958
      %v960 = vpop.f32.mrb[0].mxu0
      %v961 = vpop.f32.mrb[0].mxu0
      %v962 = vadd.f32 %v897, %v961
      %v963 = vpop.f32.mrb[0].mxu0
      %964 = vmatprep.mubr.bf16.mxu0 0
      %965 = vmatmul.mubr.bf16.gmra.mrb[0].mxu0 %v721
      %v966 = vpop.f32.mrb[0].mxu0
      %v967 = vadd.f32 %v902, %v966
      %v968 = vpop.f32.mrb[0].mxu0
      %v969 = vpop.f32.mrb[0].mxu0
      %v970 = vadd.f32 %v905, %v969
      %v971 = vpop.f32.mrb[0].mxu0
      %972 = vmatprep.mubr.bf16.mxu0 0
      %973 = vmatmul.mubr.bf16.gmra.mrb[0].mxu0 %v724
      %v974 = vpop.f32.mrb[0].mxu0
      %v975 = vadd.f32 %v910, %v974
      %v976 = vpop.f32.mrb[0].mxu0
      %v977 = vpop.f32.mrb[0].mxu0
      %v978 = vadd.f32 %v913, %v977
      %v979 = vpop.f32.mrb[0].mxu0
      %980 = vmatprep.mubr.bf16.mxu0 0
      %981 = vmatmul.mubr.bf16.gmra.mrb[0].mxu0 %v727
      %v982 = vpop.f32.mrb[0].mxu0
      %v983 = vadd.f32 %v918, %v982
      %v984 = vpop.f32.mrb[0].mxu0
      %v985 = vpop.f32.mrb[0].mxu0
      %v986 = vadd.f32 %v921, %v985
      %v987 = vpop.f32.mrb[0].mxu0
      %988 = vdwg.mxu0
      %v989 = vmax.f32 %v959, 0.0
      %v990 = vmax.f32 %v962, 0.0
      %v991 = vmax.f32 %v967, 0.0
      %v992 = vmax.f32 %v970, 0.0
      %v993 = vmax.f32 %v975, 0.0
      %v994 = vmax.f32 %v978, 0.0
      %v995 = vmax.f32 %v983, 0.0
      %v996 = vmax.f32 %v986, 0.0
      %v997 = vld [vmem:[%s3] sm:$0x1]
      %v999 = vlaneseq
      %v1000 = vshrl.u32 %v999, 7
      %v1001 = vsub.s32 0, %v1000
      %v1002 = vrot.slane %v997, %v1001
      %v1004 = vmul.f32 %v989, %v1002
      %v1005 = vmul.f32 %v990, %v1002
      %v1006 = vmul.f32 %v991, %v1002
      %v1007 = vmul.f32 %v992, %v1002
      %v1008 = vmul.f32 %v993, %v1002
      %v1009 = vmul.f32 %v994, %v1002
      %v1010 = vmul.f32 %v995, %v1002
      %v1011 = vmul.f32 %v996, %v1002
      %vm1012 = vcmask 80896
      %v1013 = vsel %vm1012, %v1004, 0.0
      %1014 = vadd.xlane.f32.xlu0 %v1013
      %v1015 = vpop.xlane.xlu0 %1014
      %v1016 = vsel %vm1012, %v1005, 0.0
      %1017 = vadd.xlane.f32.xlu0 %v1016
      %v1018 = vpop.xlane.xlu0 %1017
      %v1019 = vsel %vm1012, %v1006, 0.0
      %1020 = vadd.xlane.f32.xlu0 %v1019
      %v1021 = vpop.xlane.xlu0 %1020
      %v1022 = vsel %vm1012, %v1007, 0.0
      %1023 = vadd.xlane.f32.xlu0 %v1022
      %v1024 = vpop.xlane.xlu0 %1023
      %v1025 = vsel %vm1012, %v1008, 0.0
      %1026 = vadd.xlane.f32.xlu0 %v1025
      %v1027 = vpop.xlane.xlu0 %1026
      %v1028 = vsel %vm1012, %v1009, 0.0
      %1029 = vadd.xlane.f32.xlu0 %v1028
      %v1030 = vpop.xlane.xlu0 %1029
      %v1031 = vsel %vm1012, %v1010, 0.0
      %1032 = vadd.xlane.f32.xlu0 %v1031
      %v1033 = vpop.xlane.xlu0 %1032
      %v1034 = vsel %vm1012, %v1011, 0.0
      %1035 = vadd.xlane.f32.xlu0 %v1034
      %v1036 = vpop.xlane.xlu0 %1035
      %s1037 = sld [smem:[#allocation2]]
      %v1038 = vstv %s1037
      %v1039 = vadd.f32 %v1015, %v1038
      %v1040 = vadd.f32 %v1018, %v1038
      %v1041 = vadd.f32 %v1021, %v1038
      %v1042 = vadd.f32 %v1024, %v1038
      %v1043 = vadd.f32 %v1027, %v1038
      %v1044 = vadd.f32 %v1030, %v1038
      %v1045 = vadd.f32 %v1033, %v1038
      %v1046 = vadd.f32 %v1036, %v1038
      %vm1047 = vcmask 7168
      %1048 = vst.msk [vmem:[%s230] sm:$0xff] %vm1047, %v1039
      %1049 = vst.msk [vmem:[%s230 + $0x8] sm:$0xff] %vm1047, %v1040
      %1050 = vst.msk [vmem:[%s230 + $0x10] sm:$0xff] %vm1047, %v1041
      %1051 = vst.msk [vmem:[%s230 + $0x18] sm:$0xff] %vm1047, %v1042
      %1052 = vst.msk [vmem:[%s230 + $0x20] sm:$0xff] %vm1047, %v1043
      %1053 = vst.msk [vmem:[%s230 + $0x28] sm:$0xff] %vm1047, %v1044
      %1054 = vst.msk [vmem:[%s230 + $0x30] sm:$0xff] %vm1047, %v1045
      %1055 = vst.msk [vmem:[%s230 + $0x38] sm:$0xff] %vm1047, %v1046
      %s1056 = smul.u32 8, %s17
      %p1057 = scmp.lt.s32.totalorder %s1056, 31
      %s1058 = scalar_select %p1057, %s1056, 31
      %s1059 = smul.addr %s1058, 8
      %s1060 = scalar_lea.vmem %s5, %s1059
      // Predicated region
      $region41: #{simplenet_forward.1} parent=39 // pred_check
        %p1061 = pneg %p145
      $region42: #{simplenet_forward.1} parent=39 // pred_check_branch
        %1063 = sbr.rel (%p1061) target = $region44
      $region43: #{simplenet_forward.1} parent=39 // pred_region
        %s1064 = smul.u32 8, %s17
      $region44: #{simplenet_forward.1} parent=39 // pred_fallthru
        _
    $region40: #{simplenet_forward.1} parent=5 // pred_fallthru
      _
    %p1065 = scmp.le.s32.totalorder 2, %s12
    // Predicated region
    $region45: #{simplenet_forward.1} parent=5 // pred_check
      %p1066 = pneg %p1065
    $region46: #{simplenet_forward.1} parent=5 // pred_check_branch
      %1068 = sbr.rel (%p1066) target = $region48
    $region47: #{simplenet_forward.1} parent=5 // pred_region
      %s1069 = ssub.s32 %s12, 2
      // Predicated region
      $region49: #{simplenet_forward.1} parent=47 // pred_check
        %p1070 = pneg %p151
      $region50: #{simplenet_forward.1} parent=47 // pred_check_branch
        %1072 = sbr.rel (%p1070) target = $region52
      $region51: #{simplenet_forward.1} parent=47 // pred_region
        %s1073 = smul.u32 8, %s18
        %p1074 = scmp.lt.s32.totalorder %s1073, 31
        %s1075 = scalar_select %p1074, %s1073, 31
        %s1076 = smul.addr %s1075, 8
        %s1077 = scalar_lea.vmem %s5, %s1076
      $region52: #{simplenet_forward.1} parent=47 // pred_fallthru
        _
    $region48: #{simplenet_forward.1} parent=5 // pred_fallthru
      _
  $region6: #{simplenet_forward.1} parent=0 // loop_footer
    %s16 = sadd.s32 1, %s12
  $region7: #{simplenet_forward.1} parent=0 // loop_footer_branch
    %11 = sbr.rel target = $region3
  $region8: #{simplenet_forward.1} parent=0 // loop_exit
    _

</llo_original>
